<compile_context>
chip_gen: v6e
topology: v6e:2x2x1
jax: 0.10.0
libtpu: 0.0.40
codegen_flags: <defaults>
</compile_context>

<pallas_src>
import functools

import jax
import jax.numpy as jnp
from jax.experimental import pallas as pl
from jax.experimental.pallas import tpu as pltpu

# Logical (in, out) dims of the *used* layers: dense1, dense2, dense12, dense13.
LAYER_DIMS = [(5, 10), (10, 16), (16, 8), (8, 1)]

# Padded (in, out) dims so every MXU contraction is sublane-aligned.  Only the
# first layer actually needs padding (5->8, 10->16); the rest are already true.
PAD_DIMS = [(8, 16), (16, 16), (16, 8), (8, 1)]
IN_PAD = PAD_DIMS[0][0]     # 8  (padded feature dim of x)
OUT_DIM = PAD_DIMS[-1][1]   # 1  (true output width of dense13)

LANE = 128                  # batch maps onto the 128-lane axis


def _round_up(n, m):
    return (n + m - 1) // m * m


def _cdiv(a, b):
    return (a + b - 1) // b


def _qnet_kernel(x_ref,
                 w1_ref, b1_ref,
                 w2_ref, b2_ref,
                 w3_ref, b3_ref,
                 w4_ref, b4_ref,
                 o_ref):
    # Lane-dense: batch on lanes everywhere.  h: (features, tile_b).
    h = x_ref[...]                                            # (IN_PAD, tile_b)
    for w_ref, b_ref in ((w1_ref, b1_ref), (w2_ref, b2_ref),
                         (w3_ref, b3_ref), (w4_ref, b4_ref)):
        h = jnp.maximum(
            jnp.dot(w_ref[...], h, preferred_element_type=jnp.float32)
            + b_ref[...], 0.0)                                # bias (out,1) lane-broadcast
    o_ref[...] = h.astype(o_ref.dtype)                        # (1, tile_b)


def prepare_params(params):
    """Pad PyTorch-layout params (w: (out,in), b: (out,)) ONCE to kernel layout.

    Returns a flat tuple (w1, b1, ..., w4, b4) with w: (out_pad, in_pad),
    b: (out_pad, 1); padding is zero-filled (numerically exact for this net).
    """
    padded = []
    for (w, b), (in_pad, out_pad) in zip(params, PAD_DIMS):
        o, i = w.shape
        wp = jnp.zeros((out_pad, in_pad), jnp.float32).at[:o, :i].set(
            w.astype(jnp.float32))
        bp = jnp.zeros((out_pad, 1), jnp.float32).at[:o, 0].set(
            b.astype(jnp.float32))
        padded.append(wp)
        padded.append(bp)
    return tuple(padded)


@functools.partial(jax.jit, static_argnames=("max_tile_b",))
def qnet_forward(x, padded_params, *, max_tile_b=8192):
    """x: (B, 5) float32 -> (B, 1) float32 (matches QNet.forward incl. final ReLU)."""
    B, F = x.shape

    # Batch-tiling policy:
    #   * tile is a multiple of 128 (batch is the lane axis);
    #   * tile is capped so per-tile VMEM stays small on v7x (64 MiB);
    #   * tile = round_up(cdiv(B, n_tiles), 128) so batch padding is at most
    #     about one lane group per block;
    #   * when the batch is big enough, force >=2 blocks so both v7x
    #     TensorCores get work under dimension_semantics=("parallel",).
    n_tiles = _cdiv(B, max_tile_b)
    if B >= 2 * LANE:
        n_tiles = max(n_tiles, 2)
    tile_b = _round_up(_cdiv(B, n_tiles), LANE)
    grid_b = _cdiv(B, tile_b)
    b_pad = grid_b * tile_b

    # Single layout pass: transpose to (features, batch) so the batch maps to
    # lanes, pad features 5->8 and batch to a multiple of the tile.
    xt = jnp.zeros((IN_PAD, b_pad), jnp.float32)
    xt = xt.at[:F, :B].set(x.astype(jnp.float32).T)

    x_spec = pl.BlockSpec((IN_PAD, tile_b), lambda i: (0, i))
    out_spec = pl.BlockSpec((OUT_DIM, tile_b), lambda i: (0, i))
    resident = lambda shape: pl.BlockSpec(shape, lambda i: (0, 0))  # fetched once

    param_specs = []
    for (in_pad, out_pad) in PAD_DIMS:
        param_specs.append(resident((out_pad, in_pad)))   # weight (out, in)
        param_specs.append(resident((out_pad, 1)))        # bias   (out, 1)

    flops = 2 * b_pad * sum(i * o for i, o in LAYER_DIMS)
    bytes_accessed = 4 * (b_pad * (IN_PAD + OUT_DIM)
                          + sum(i * o + o for i, o in PAD_DIMS))

    out_t = pl.pallas_call(
        _qnet_kernel,
        out_shape=jax.ShapeDtypeStruct((OUT_DIM, b_pad), jnp.float32),
        grid=(grid_b,),
        in_specs=[x_spec] + param_specs,
        out_specs=out_spec,
        compiler_params=pltpu.CompilerParams(
            dimension_semantics=("parallel",)),
        cost_estimate=pl.CostEstimate(
            flops=flops, transcendentals=0, bytes_accessed=bytes_accessed),
    )(xt, *padded_params)

    return out_t[0, :B].reshape(B, 1)


def init_params(key):
    """Deterministic synthetic init matching the PyTorch shapes (used layers only).

    Weights in PyTorch orientation (out, in), ~N(0, 0.1) as in the module;
    biases ~U(-1/sqrt(in), 1/sqrt(in)) (PyTorch's default Linear bias init).
    """
    params = []
    for (fan_in, fan_out) in LAYER_DIMS:
        key, kw, kb = jax.random.split(key, 3)
        w = 0.1 * jax.random.normal(kw, (fan_out, fan_in), jnp.float32)
        bound = 1.0 / jnp.sqrt(jnp.float32(fan_in))
        b = jax.random.uniform(kb, (fan_out,), jnp.float32, -bound, bound)
        params.append((w, b))
    return params


def _ref_forward(x, params):
    """Pure-JAX reference (the module really does ReLU its final output)."""
    h = x
    for (w, b) in params:
        h = jnp.maximum(h @ w.T + b, 0.0)
    return h


if __name__ == "__main__":
    key = jax.random.PRNGKey(0)
    key, kx1, kx2 = jax.random.split(key, 3)
    params = init_params(key)
    padded = prepare_params(params)   # padding hoisted out of the forward path

    # Small RL-inference batch (single grid step, tile padded to one lane group).
    x1 = jax.random.normal(kx1, (4, 5), jnp.float32)
    y1 = qnet_forward(x1, padded)
    jax.block_until_ready(y1)
    assert y1.shape == (4, 1)
    assert jnp.allclose(y1, _ref_forward(x1, params), atol=1e-5, rtol=1e-5)

    # Larger batch that exercises a multi-block grid (B=300 not a tile multiple).
    x2 = jax.random.normal(kx2, (300, 5), jnp.float32)
    y2 = qnet_forward(x2, padded, max_tile_b=128)
    jax.block_until_ready(y2)
    assert y2.shape == (300, 1)
    assert jnp.allclose(y2, _ref_forward(x2, params), atol=1e-5, rtol=1e-5)

    print("KERNEL_OK")
</pallas_src>

<mosaic_0001>
module attributes {stable_mosaic.version = 11 : i64} {
  func.func @_qnet_kernel(%arg0: i32, %arg1: memref<8x128xf32, #tpu.memory_space<vmem>>, %arg2: memref<16x8xf32, #tpu.memory_space<vmem>>, %arg3: memref<16x1xf32, #tpu.memory_space<vmem>>, %arg4: memref<16x16xf32, #tpu.memory_space<vmem>>, %arg5: memref<16x1xf32, #tpu.memory_space<vmem>>, %arg6: memref<8x16xf32, #tpu.memory_space<vmem>>, %arg7: memref<8x1xf32, #tpu.memory_space<vmem>>, %arg8: memref<1x8xf32, #tpu.memory_space<vmem>>, %arg9: memref<1x1xf32, #tpu.memory_space<vmem>>, %arg10: memref<1x128xf32, #tpu.memory_space<vmem>>) attributes {dimension_semantics = [#tpu.dimension_semantics<parallel>], iteration_bounds = array<i64: 1>, scalar_prefetch = 0 : i64, scratch_operands = 0 : i64, tpu.core_type = #tpu.core_type<tc>, window_params = [{transform_indices = @transform_0, window_bounds = array<i64: 8, 128>}, {pipeline_mode = #tpu.pipeline_mode<synchronous>, transform_indices = @transform_1, window_bounds = array<i64: 16, 8>}, {pipeline_mode = #tpu.pipeline_mode<synchronous>, transform_indices = @transform_2, window_bounds = array<i64: 16, 1>}, {pipeline_mode = #tpu.pipeline_mode<synchronous>, transform_indices = @transform_3, window_bounds = array<i64: 16, 16>}, {pipeline_mode = #tpu.pipeline_mode<synchronous>, transform_indices = @transform_4, window_bounds = array<i64: 16, 1>}, {pipeline_mode = #tpu.pipeline_mode<synchronous>, transform_indices = @transform_5, window_bounds = array<i64: 8, 16>}, {pipeline_mode = #tpu.pipeline_mode<synchronous>, transform_indices = @transform_6, window_bounds = array<i64: 8, 1>}, {pipeline_mode = #tpu.pipeline_mode<synchronous>, transform_indices = @transform_7, window_bounds = array<i64: 1, 8>}, {pipeline_mode = #tpu.pipeline_mode<synchronous>, transform_indices = @transform_8, window_bounds = array<i64: 1, 1>}, {transform_indices = @transform_9, window_bounds = array<i64: 1, 128>}]} {
    %c0 = arith.constant 0 : index
    %c0_0 = arith.constant 0 : index
    %0 = vector.load %arg1[%c0, %c0_0] : memref<8x128xf32, #tpu.memory_space<vmem>>, vector<8x128xf32>
    %c0_1 = arith.constant 0 : index
    %c0_2 = arith.constant 0 : index
    %1 = vector.load %arg2[%c0_1, %c0_2] : memref<16x8xf32, #tpu.memory_space<vmem>>, vector<16x8xf32>
    %cst = arith.constant dense<0.000000e+00> : vector<16x128xf32>
    %2 = tpu.matmul %1, %0, %cst {dimension_numbers = #tpu.dot_dimension_numbers<[1], [0], [0], [1], [0, 0, 1, 1], [], []>} : vector<16x8xf32>, vector<8x128xf32>, vector<16x128xf32> -> vector<16x128xf32>
    %c0_3 = arith.constant 0 : index
    %c0_4 = arith.constant 0 : index
    %3 = vector.load %arg3[%c0_3, %c0_4] : memref<16x1xf32, #tpu.memory_space<vmem>>, vector<16x1xf32>
    %4 = vector.broadcast %3 : vector<16x1xf32> to vector<16x128xf32>
    %5 = arith.addf %2, %4 : vector<16x128xf32>
    %cst_5 = arith.constant 0.000000e+00 : f32
    %6 = vector.broadcast %cst_5 : f32 to vector<16x128xf32>
    %7 = arith.maximumf %5, %6 : vector<16x128xf32>
    %c0_6 = arith.constant 0 : index
    %c0_7 = arith.constant 0 : index
    %8 = vector.load %arg4[%c0_6, %c0_7] : memref<16x16xf32, #tpu.memory_space<vmem>>, vector<16x16xf32>
    %cst_8 = arith.constant dense<0.000000e+00> : vector<16x128xf32>
    %9 = tpu.matmul %8, %7, %cst_8 {dimension_numbers = #tpu.dot_dimension_numbers<[1], [0], [0], [1], [0, 0, 1, 1], [], []>} : vector<16x16xf32>, vector<16x128xf32>, vector<16x128xf32> -> vector<16x128xf32>
    %c0_9 = arith.constant 0 : index
    %c0_10 = arith.constant 0 : index
    %10 = vector.load %arg5[%c0_9, %c0_10] : memref<16x1xf32, #tpu.memory_space<vmem>>, vector<16x1xf32>
    %11 = vector.broadcast %10 : vector<16x1xf32> to vector<16x128xf32>
    %12 = arith.addf %9, %11 : vector<16x128xf32>
    %cst_11 = arith.constant 0.000000e+00 : f32
    %13 = vector.broadcast %cst_11 : f32 to vector<16x128xf32>
    %14 = arith.maximumf %12, %13 : vector<16x128xf32>
    %c0_12 = arith.constant 0 : index
    %c0_13 = arith.constant 0 : index
    %15 = vector.load %arg6[%c0_12, %c0_13] : memref<8x16xf32, #tpu.memory_space<vmem>>, vector<8x16xf32>
    %cst_14 = arith.constant dense<0.000000e+00> : vector<8x128xf32>
    %16 = tpu.matmul %15, %14, %cst_14 {dimension_numbers = #tpu.dot_dimension_numbers<[1], [0], [0], [1], [0, 0, 1, 1], [], []>} : vector<8x16xf32>, vector<16x128xf32>, vector<8x128xf32> -> vector<8x128xf32>
    %c0_15 = arith.constant 0 : index
    %c0_16 = arith.constant 0 : index
    %17 = vector.load %arg7[%c0_15, %c0_16] : memref<8x1xf32, #tpu.memory_space<vmem>>, vector<8x1xf32>
    %18 = vector.broadcast %17 : vector<8x1xf32> to vector<8x128xf32>
    %19 = arith.addf %16, %18 : vector<8x128xf32>
    %cst_17 = arith.constant 0.000000e+00 : f32
    %20 = vector.broadcast %cst_17 : f32 to vector<8x128xf32>
    %21 = arith.maximumf %19, %20 : vector<8x128xf32>
    %c0_18 = arith.constant 0 : index
    %c0_19 = arith.constant 0 : index
    %22 = vector.load %arg8[%c0_18, %c0_19] : memref<1x8xf32, #tpu.memory_space<vmem>>, vector<1x8xf32>
    %cst_20 = arith.constant dense<0.000000e+00> : vector<1x128xf32>
    %23 = tpu.matmul %22, %21, %cst_20 {dimension_numbers = #tpu.dot_dimension_numbers<[1], [0], [0], [1], [0, 0, 1, 1], [], []>} : vector<1x8xf32>, vector<8x128xf32>, vector<1x128xf32> -> vector<1x128xf32>
    %c0_21 = arith.constant 0 : index
    %c0_22 = arith.constant 0 : index
    %24 = vector.load %arg9[%c0_21, %c0_22] : memref<1x1xf32, #tpu.memory_space<vmem>>, vector<1x1xf32>
    %25 = vector.broadcast %24 : vector<1x1xf32> to vector<1x128xf32>
    %26 = arith.addf %23, %25 : vector<1x128xf32>
    %cst_23 = arith.constant 0.000000e+00 : f32
    %27 = vector.broadcast %cst_23 : f32 to vector<1x128xf32>
    %28 = arith.maximumf %26, %27 : vector<1x128xf32>
    %c0_24 = arith.constant 0 : index
    %c0_25 = arith.constant 0 : index
    %29 = vector.load %arg10[%c0_24, %c0_25] : memref<1x128xf32, #tpu.memory_space<vmem>>, vector<1x128xf32>
    tpu.vector_store %arg10[%c0_24, %c0_25], %28 {strides = array<i32>} : memref<1x128xf32, #tpu.memory_space<vmem>>, vector<1x128xf32>,
    return
  }
  func.func @transform_0(%arg0: i32) -> (i32, i32) {
    %c0_i32 = arith.constant 0 : i32
    %c0_i32_0 = arith.constant 0 : i32
    return %c0_i32, %arg0 : i32, i32
  }
  func.func @transform_1(%arg0: i32) -> (i32, i32) {
    %c0_i32 = arith.constant 0 : i32
    %c0_i32_0 = arith.constant 0 : i32
    %c0_i32_1 = arith.constant 0 : i32
    return %c0_i32, %c0_i32_0 : i32, i32
  }
  func.func @transform_2(%arg0: i32) -> (i32, i32) {
    %c0_i32 = arith.constant 0 : i32
    %c0_i32_0 = arith.constant 0 : i32
    %c0_i32_1 = arith.constant 0 : i32
    return %c0_i32, %c0_i32_0 : i32, i32
  }
  func.func @transform_3(%arg0: i32) -> (i32, i32) {
    %c0_i32 = arith.constant 0 : i32
    %c0_i32_0 = arith.constant 0 : i32
    %c0_i32_1 = arith.constant 0 : i32
    return %c0_i32, %c0_i32_0 : i32, i32
  }
  func.func @transform_4(%arg0: i32) -> (i32, i32) {
    %c0_i32 = arith.constant 0 : i32
    %c0_i32_0 = arith.constant 0 : i32
    %c0_i32_1 = arith.constant 0 : i32
    return %c0_i32, %c0_i32_0 : i32, i32
  }
  func.func @transform_5(%arg0: i32) -> (i32, i32) {
    %c0_i32 = arith.constant 0 : i32
    %c0_i32_0 = arith.constant 0 : i32
    %c0_i32_1 = arith.constant 0 : i32
    return %c0_i32, %c0_i32_0 : i32, i32
  }
  func.func @transform_6(%arg0: i32) -> (i32, i32) {
    %c0_i32 = arith.constant 0 : i32
    %c0_i32_0 = arith.constant 0 : i32
    %c0_i32_1 = arith.constant 0 : i32
    return %c0_i32, %c0_i32_0 : i32, i32
  }
  func.func @transform_7(%arg0: i32) -> (i32, i32) {
    %c0_i32 = arith.constant 0 : i32
    %c0_i32_0 = arith.constant 0 : i32
    %c0_i32_1 = arith.constant 0 : i32
    return %c0_i32, %c0_i32_0 : i32, i32
  }
  func.func @transform_8(%arg0: i32) -> (i32, i32) {
    %c0_i32 = arith.constant 0 : i32
    %c0_i32_0 = arith.constant 0 : i32
    %c0_i32_1 = arith.constant 0 : i32
    return %c0_i32, %c0_i32_0 : i32, i32
  }
  func.func @transform_9(%arg0: i32) -> (i32, i32) {
    %c0_i32 = arith.constant 0 : i32
    %c0_i32_0 = arith.constant 0 : i32
    return %c0_i32, %arg0 : i32, i32
  }
}

</mosaic_0001>

<llo_original>
// kernel: qnet_forward.1
$region0: #{qnet_forward.1}
  #allocation0 [shape = 'u32[]', space=smem, size = 0x4, offset = 0x4, fixed_abs, tag = 'smem constant byte address 0x4 - core index']
  #allocation1 [shape = 'u32[144,128]{1,0:T(1,128)}', space=vmem, size = 0x12000, scoped, tag = 'internal scratch']
  #allocation2 [shape = 'f32[1,1]{1,0:T(1,128)S(1)}', space=vmem, size = 0x200, scoped, tag = 'scoped memory for qnet_forward.1']
  %s0 = inlined_call_operand.vmem [shape: f32[8,128], index: 0, kind: input, shape index: {}]
  %s1 = inlined_call_operand.vmem [shape: f32[16,8], index: 1, kind: input, shape index: {}]
  %s2 = inlined_call_operand.vmem [shape: f32[16,1], index: 2, kind: input, shape index: {}]
  %s3 = inlined_call_operand.vmem [shape: f32[16,16], index: 3, kind: input, shape index: {}]
  %s4 = inlined_call_operand.vmem [shape: f32[16,1], index: 4, kind: input, shape index: {}]
  %s5 = inlined_call_operand.vmem [shape: f32[8,16], index: 5, kind: input, shape index: {}]
  %s6 = inlined_call_operand.vmem [shape: f32[8,1], index: 6, kind: input, shape index: {}]
  %s7 = inlined_call_operand.vmem [shape: f32[1,8], index: 7, kind: input, shape index: {}]
  %s8 = inlined_call_operand.<no memory space> [shape: f32[1,1], index: 8, kind: input, shape index: {}]
  %s9 = inlined_call_operand.vmem [shape: f32[1,128], index: 9, kind: output, shape index: {}]
  %s10 = sld [smem:[#allocation0]]
  $region46: #{qnet_forward.1} parent=0
    _
  %s12 = ssub.s32 1, %s10
  %s13 = scalar_select 0, %s12, %s10
  %v14 = vstv %s8
  %15 = vst [vmem:[#allocation2] sm:$0x1] %v14
  // Predicated region
  $region2: #{qnet_forward.1} parent=0 // pred_check
    _
  $region3: #{qnet_forward.1} parent=0 // pred_check_branch
    %17 = sbr.rel (0) target = $region5
  $region4: #{qnet_forward.1} parent=0 // pred_region
    _
  $region5: #{qnet_forward.1} parent=0 // pred_fallthru
    _
  // Predicated region
  $region6: #{qnet_forward.1} parent=0 // pred_check
    _
  $region7: #{qnet_forward.1} parent=0 // pred_check_branch
    %19 = sbr.rel (0) target = $region9
  $region8: #{qnet_forward.1} parent=0 // pred_region
    _
  $region9: #{qnet_forward.1} parent=0 // pred_fallthru
    _
  // Predicated region
  $region10: #{qnet_forward.1} parent=0 // pred_check
    _
  $region11: #{qnet_forward.1} parent=0 // pred_check_branch
    %21 = sbr.rel (0) target = $region13
  $region12: #{qnet_forward.1} parent=0 // pred_region
    _
  $region13: #{qnet_forward.1} parent=0 // pred_fallthru
    _
  // Predicated region
  $region14: #{qnet_forward.1} parent=0 // pred_check
    _
  $region15: #{qnet_forward.1} parent=0 // pred_check_branch
    %23 = sbr.rel (0) target = $region17
  $region16: #{qnet_forward.1} parent=0 // pred_region
    _
  $region17: #{qnet_forward.1} parent=0 // pred_fallthru
    _
  // Predicated region
  $region18: #{qnet_forward.1} parent=0 // pred_check
    _
  $region19: #{qnet_forward.1} parent=0 // pred_check_branch
    %25 = sbr.rel (0) target = $region21
  $region20: #{qnet_forward.1} parent=0 // pred_region
    _
  $region21: #{qnet_forward.1} parent=0 // pred_fallthru
    _
  // Predicated region
  $region22: #{qnet_forward.1} parent=0 // pred_check
    _
  $region23: #{qnet_forward.1} parent=0 // pred_check_branch
    %27 = sbr.rel (0) target = $region25
  $region24: #{qnet_forward.1} parent=0 // pred_region
    _
  $region25: #{qnet_forward.1} parent=0 // pred_fallthru
    _
  // Predicated region
  $region26: #{qnet_forward.1} parent=0 // pred_check
    _
  $region27: #{qnet_forward.1} parent=0 // pred_check_branch
    %29 = sbr.rel (0) target = $region29
  $region28: #{qnet_forward.1} parent=0 // pred_region
    _
  $region29: #{qnet_forward.1} parent=0 // pred_fallthru
    _
  // Predicated region
  $region30: #{qnet_forward.1} parent=0 // pred_check
    _
  $region31: #{qnet_forward.1} parent=0 // pred_check_branch
    %31 = sbr.rel (0) target = $region33
  $region32: #{qnet_forward.1} parent=0 // pred_region
    _
  $region33: #{qnet_forward.1} parent=0 // pred_fallthru
    _
  // Predicated region
  $region34: #{qnet_forward.1} parent=0 // pred_check
    _
  $region35: #{qnet_forward.1} parent=0 // pred_check_branch
    %33 = sbr.rel (0) target = $region37
  $region36: #{qnet_forward.1} parent=0 // pred_region
    _
  $region37: #{qnet_forward.1} parent=0 // pred_fallthru
    _
  %v34 = vld [vmem:[%s0] sm:$0xff]
  %v35 = vld [vmem:[%s1] sm:$0xff]
  %v36 = vld [vmem:[%s1 + $0x8] sm:$0xff]
  %v37 = vld [vmem:[%s2] sm:$0xff]
  %v38 = vld [vmem:[%s2 + $0x8] sm:$0xff]
  %40 = vset.pattern.permute.xlu0 0
  %41 = vperm.xlu0 %40, %v37
  %v42 = vpop.permute.xlu0 %41
  %45 = vset.pattern.permute.xlu0 0
  %46 = vperm.xlu0 %45, %v38
  %v47 = vpop.permute.xlu0 %46
  %vm49 = vcmask 64512
  %v51 = vsel %vm49, %v35, 0
  %v54 = vsel %vm49, %v36, 0
  %56 = vmatprep.subr.mxu0 0.0
  %57 = vmatpush1.msra.mxu0 0.0
  %58 = vmatprep.subr.mxu0 0.0
  %59 = vmatpush1.msra.mxu0 0.0
  %60 = vmatprep.subr.mxu0 0.0
  %61 = vmatpush1.msra.mxu0 0.0
  %62 = vmatprep.subr.mxu0 0.0
  %63 = vmatpush1.msra.mxu0 0.0
  %64 = vmatprep.subr.mxu0 0.0
  %65 = vmatpush1.msra.mxu0 0.0
  %66 = vmatprep.subr.mxu0 0.0
  %67 = vmatpush1.msra.mxu0 0.0
  %68 = vmatprep.subr.mxu0 0.0
  %69 = vmatpush1.msra.mxu0 0.0
  %70 = vmatprep.subr.mxu0 0.0
  %71 = vmatpush1.msra.mxu0 0.0
  %72 = vmatprep.subr.mxu0 0.0
  %73 = vmatpush1.msra.mxu0 0.0
  %74 = vmatprep.subr.mxu0 0.0
  %75 = vmatpush1.msra.mxu0 0.0
  %76 = vmatprep.subr.mxu0 0.0
  %77 = vmatpush1.msra.mxu0 0.0
  %78 = vmatprep.subr.mxu0 0.0
  %79 = vmatpush1.msra.mxu0 0.0
  %80 = vmatprep.subr.mxu0 0.0
  %81 = vmatpush1.msra.mxu0 0.0
  %82 = vmatprep.subr.mxu0 0.0
  %83 = vmatpush1.msra.mxu0 0.0
  %84 = vmatprep.subr.mxu0 0.0
  %85 = vmatpush1.msra.mxu0 0.0
  %86 = vmatprep.subr.mxu0 0.0
  %87 = vmatpush1.msra.mxu0 %v34
  %88 = vmatprep.subr.mxu0 0.0
  %89 = vmatpush2.msra.mxu0 0.0
  %90 = vmatprep.subr.mxu0 0.0
  %91 = vmatpush2.msra.mxu0 0.0
  %92 = vmatprep.subr.mxu0 0.0
  %93 = vmatpush2.msra.mxu0 0.0
  %94 = vmatprep.subr.mxu0 0.0
  %95 = vmatpush2.msra.mxu0 0.0
  %96 = vmatprep.subr.mxu0 0.0
  %97 = vmatpush2.msra.mxu0 0.0
  %98 = vmatprep.subr.mxu0 0.0
  %99 = vmatpush2.msra.mxu0 0.0
  %100 = vmatprep.subr.mxu0 0.0
  %101 = vmatpush2.msra.mxu0 0.0
  %102 = vmatprep.subr.mxu0 0.0
  %103 = vmatpush2.msra.mxu0 0.0
  %104 = vmatprep.subr.mxu0 0.0
  %105 = vmatpush2.msra.mxu0 0.0
  %106 = vmatprep.subr.mxu0 0.0
  %107 = vmatpush2.msra.mxu0 0.0
  %108 = vmatprep.subr.mxu0 0.0
  %109 = vmatpush2.msra.mxu0 0.0
  %110 = vmatprep.subr.mxu0 0.0
  %111 = vmatpush2.msra.mxu0 0.0
  %112 = vmatprep.subr.mxu0 0.0
  %113 = vmatpush2.msra.mxu0 0.0
  %114 = vmatprep.subr.mxu0 0.0
  %115 = vmatpush2.msra.mxu0 0.0
  %116 = vmatprep.subr.mxu0 0.0
  %117 = vmatpush2.msra.mxu0 0.0
  %118 = vmatprep.subr.mxu0 0.0
  %119 = vmatpush2.msra.mxu0 0.0
  %120 = vmatprep.mubr.f32.mxu0 0.0
  %121 = vmatmul.mubr.f32.gmra.mxu0 %v51
  %v122 = vpop.f32.mrf.mxu0
  %v123 = vadd.f32 %v42, %v122
  %v124 = vpop.f32.mrf.mxu0
  %125 = vmatprep.mubr.f32.mxu0 0.0
  %126 = vmatmul.mubr.f32.gmra.mxu0 %v54
  %v127 = vpop.f32.mrf.mxu0
  %v128 = vadd.f32 %v47, %v127
  %v129 = vpop.f32.mrf.mxu0
  %130 = vdwg.mxu0
  %v131 = vmax.f32 %v123, 0.0
  %v132 = vmax.f32 %v128, 0.0
  %v133 = vld [vmem:[%s3] sm:$0xff]
  %v134 = vld [vmem:[%s3 + $0x8] sm:$0xff]
  %v135 = vld [vmem:[%s4] sm:$0xff]
  %v136 = vld [vmem:[%s4 + $0x8] sm:$0xff]
  %138 = vset.pattern.permute.xlu0 0
  %139 = vperm.xlu0 %138, %v135
  %v140 = vpop.permute.xlu0 %139
  %143 = vset.pattern.permute.xlu0 0
  %144 = vperm.xlu0 %143, %v136
  %v145 = vpop.permute.xlu0 %144
  %vm147 = vcmask 130048
  %v149 = vsel %vm147, %v133, 0
  %v152 = vsel %vm147, %v134, 0
  %154 = vmatprep.subr.mxu0 0.0
  %155 = vmatpush1.msra.mxu0 0.0
  %156 = vmatprep.subr.mxu0 0.0
  %157 = vmatpush1.msra.mxu0 0.0
  %158 = vmatprep.subr.mxu0 0.0
  %159 = vmatpush1.msra.mxu0 0.0
  %160 = vmatprep.subr.mxu0 0.0
  %161 = vmatpush1.msra.mxu0 0.0
  %162 = vmatprep.subr.mxu0 0.0
  %163 = vmatpush1.msra.mxu0 0.0
  %164 = vmatprep.subr.mxu0 0.0
  %165 = vmatpush1.msra.mxu0 0.0
  %166 = vmatprep.subr.mxu0 0.0
  %167 = vmatpush1.msra.mxu0 0.0
  %168 = vmatprep.subr.mxu0 0.0
  %169 = vmatpush1.msra.mxu0 0.0
  %170 = vmatprep.subr.mxu0 0.0
  %171 = vmatpush1.msra.mxu0 0.0
  %172 = vmatprep.subr.mxu0 0.0
  %173 = vmatpush1.msra.mxu0 0.0
  %174 = vmatprep.subr.mxu0 0.0
  %175 = vmatpush1.msra.mxu0 0.0
  %176 = vmatprep.subr.mxu0 0.0
  %177 = vmatpush1.msra.mxu0 0.0
  %178 = vmatprep.subr.mxu0 0.0
  %179 = vmatpush1.msra.mxu0 0.0
  %180 = vmatprep.subr.mxu0 0.0
  %181 = vmatpush1.msra.mxu0 0.0
  %182 = vmatprep.subr.mxu0 0.0
  %183 = vmatpush1.msra.mxu0 %v132
  %184 = vmatprep.subr.mxu0 0.0
  %185 = vmatpush1.msra.mxu0 %v131
  %186 = vmatprep.subr.mxu0 0.0
  %187 = vmatpush2.msra.mxu0 0.0
  %188 = vmatprep.subr.mxu0 0.0
  %189 = vmatpush2.msra.mxu0 0.0
  %190 = vmatprep.subr.mxu0 0.0
  %191 = vmatpush2.msra.mxu0 0.0
  %192 = vmatprep.subr.mxu0 0.0
  %193 = vmatpush2.msra.mxu0 0.0
  %194 = vmatprep.subr.mxu0 0.0
  %195 = vmatpush2.msra.mxu0 0.0
  %196 = vmatprep.subr.mxu0 0.0
  %197 = vmatpush2.msra.mxu0 0.0
  %198 = vmatprep.subr.mxu0 0.0
  %199 = vmatpush2.msra.mxu0 0.0
  %200 = vmatprep.subr.mxu0 0.0
  %201 = vmatpush2.msra.mxu0 0.0
  %202 = vmatprep.subr.mxu0 0.0
  %203 = vmatpush2.msra.mxu0 0.0
  %204 = vmatprep.subr.mxu0 0.0
  %205 = vmatpush2.msra.mxu0 0.0
  %206 = vmatprep.subr.mxu0 0.0
  %207 = vmatpush2.msra.mxu0 0.0
  %208 = vmatprep.subr.mxu0 0.0
  %209 = vmatpush2.msra.mxu0 0.0
  %210 = vmatprep.subr.mxu0 0.0
  %211 = vmatpush2.msra.mxu0 0.0
  %212 = vmatprep.subr.mxu0 0.0
  %213 = vmatpush2.msra.mxu0 0.0
  %214 = vmatprep.subr.mxu0 0.0
  %215 = vmatpush2.msra.mxu0 0.0
  %216 = vmatprep.subr.mxu0 0.0
  %217 = vmatpush2.msra.mxu0 0.0
  %218 = vmatprep.mubr.f32.mxu0 0.0
  %219 = vmatmul.mubr.f32.gmra.mxu0 %v149
  %v220 = vpop.f32.mrf.mxu0
  %v221 = vadd.f32 %v140, %v220
  %v222 = vpop.f32.mrf.mxu0
  %223 = vmatprep.mubr.f32.mxu0 0.0
  %224 = vmatmul.mubr.f32.gmra.mxu0 %v152
  %v225 = vpop.f32.mrf.mxu0
  %v226 = vadd.f32 %v145, %v225
  %v227 = vpop.f32.mrf.mxu0
  %228 = vdwg.mxu0
  %v229 = vmax.f32 %v221, 0.0
  %v230 = vmax.f32 %v226, 0.0
  %v231 = vld [vmem:[%s5] sm:$0xff]
  %v232 = vld [vmem:[%s6] sm:$0xff]
  %234 = vset.pattern.permute.xlu0 0
  %235 = vperm.xlu0 %234, %v232
  %v236 = vpop.permute.xlu0 %235
  %v239 = vsel %vm147, %v231, 0
  %241 = vmatprep.subr.mxu0 0.0
  %242 = vmatpush1.msra.mxu0 0.0
  %243 = vmatprep.subr.mxu0 0.0
  %244 = vmatpush1.msra.mxu0 0.0
  %245 = vmatprep.subr.mxu0 0.0
  %246 = vmatpush1.msra.mxu0 0.0
  %247 = vmatprep.subr.mxu0 0.0
  %248 = vmatpush1.msra.mxu0 0.0
  %249 = vmatprep.subr.mxu0 0.0
  %250 = vmatpush1.msra.mxu0 0.0
  %251 = vmatprep.subr.mxu0 0.0
  %252 = vmatpush1.msra.mxu0 0.0
  %253 = vmatprep.subr.mxu0 0.0
  %254 = vmatpush1.msra.mxu0 0.0
  %255 = vmatprep.subr.mxu0 0.0
  %256 = vmatpush1.msra.mxu0 0.0
  %257 = vmatprep.subr.mxu0 0.0
  %258 = vmatpush1.msra.mxu0 0.0
  %259 = vmatprep.subr.mxu0 0.0
  %260 = vmatpush1.msra.mxu0 0.0
  %261 = vmatprep.subr.mxu0 0.0
  %262 = vmatpush1.msra.mxu0 0.0
  %263 = vmatprep.subr.mxu0 0.0
  %264 = vmatpush1.msra.mxu0 0.0
  %265 = vmatprep.subr.mxu0 0.0
  %266 = vmatpush1.msra.mxu0 0.0
  %267 = vmatprep.subr.mxu0 0.0
  %268 = vmatpush1.msra.mxu0 0.0
  %269 = vmatprep.subr.mxu0 0.0
  %270 = vmatpush1.msra.mxu0 %v230
  %271 = vmatprep.subr.mxu0 0.0
  %272 = vmatpush1.msra.mxu0 %v229
  %273 = vmatprep.subr.mxu0 0.0
  %274 = vmatpush2.msra.mxu0 0.0
  %275 = vmatprep.subr.mxu0 0.0
  %276 = vmatpush2.msra.mxu0 0.0
  %277 = vmatprep.subr.mxu0 0.0
  %278 = vmatpush2.msra.mxu0 0.0
  %279 = vmatprep.subr.mxu0 0.0
  %280 = vmatpush2.msra.mxu0 0.0
  %281 = vmatprep.subr.mxu0 0.0
  %282 = vmatpush2.msra.mxu0 0.0
  %283 = vmatprep.subr.mxu0 0.0
  %284 = vmatpush2.msra.mxu0 0.0
  %285 = vmatprep.subr.mxu0 0.0
  %286 = vmatpush2.msra.mxu0 0.0
  %287 = vmatprep.subr.mxu0 0.0
  %288 = vmatpush2.msra.mxu0 0.0
  %289 = vmatprep.subr.mxu0 0.0
  %290 = vmatpush2.msra.mxu0 0.0
  %291 = vmatprep.subr.mxu0 0.0
  %292 = vmatpush2.msra.mxu0 0.0
  %293 = vmatprep.subr.mxu0 0.0
  %294 = vmatpush2.msra.mxu0 0.0
  %295 = vmatprep.subr.mxu0 0.0
  %296 = vmatpush2.msra.mxu0 0.0
  %297 = vmatprep.subr.mxu0 0.0
  %298 = vmatpush2.msra.mxu0 0.0
  %299 = vmatprep.subr.mxu0 0.0
  %300 = vmatpush2.msra.mxu0 0.0
  %301 = vmatprep.subr.mxu0 0.0
  %302 = vmatpush2.msra.mxu0 0.0
  %303 = vmatprep.subr.mxu0 0.0
  %304 = vmatpush2.msra.mxu0 0.0
  %305 = vmatprep.mubr.f32.mxu0 0.0
  %306 = vmatmul.mubr.f32.gmra.mxu0 %v239
  %v307 = vpop.f32.mrf.mxu0
  %v308 = vadd.f32 %v236, %v307
  %v309 = vpop.f32.mrf.mxu0
  %310 = vdwg.mxu0
  %v311 = vmax.f32 %v308, 0.0
  %v312 = vld [vmem:[%s7] sm:$0x1]
  %v313 = vld [vmem:[#allocation2] sm:$0x1]
  %315 = vset.pattern.permute.xlu0 0
  %316 = vperm.xlu0 %315, %v313
  %v317 = vpop.permute.xlu0 %316
  %v319 = vlaneseq
  %v320 = vshrl.u32 %v319, 7
  %v321 = vsub.s32 0, %v320
  %v322 = vrot.slane %v317, %v321
  %v324 = vsel %vm49, %v312, 0
  %326 = vmatprep.subr.mxu0 0.0
  %327 = vmatpush1.msra.mxu0 0.0
  %328 = vmatprep.subr.mxu0 0.0
  %329 = vmatpush1.msra.mxu0 0.0
  %330 = vmatprep.subr.mxu0 0.0
  %331 = vmatpush1.msra.mxu0 0.0
  %332 = vmatprep.subr.mxu0 0.0
  %333 = vmatpush1.msra.mxu0 0.0
  %334 = vmatprep.subr.mxu0 0.0
  %335 = vmatpush1.msra.mxu0 0.0
  %336 = vmatprep.subr.mxu0 0.0
  %337 = vmatpush1.msra.mxu0 0.0
  %338 = vmatprep.subr.mxu0 0.0
  %339 = vmatpush1.msra.mxu0 0.0
  %340 = vmatprep.subr.mxu0 0.0
  %341 = vmatpush1.msra.mxu0 0.0
  %342 = vmatprep.subr.mxu0 0.0
  %343 = vmatpush1.msra.mxu0 0.0
  %344 = vmatprep.subr.mxu0 0.0
  %345 = vmatpush1.msra.mxu0 0.0
  %346 = vmatprep.subr.mxu0 0.0
  %347 = vmatpush1.msra.mxu0 0.0
  %348 = vmatprep.subr.mxu0 0.0
  %349 = vmatpush1.msra.mxu0 0.0
  %350 = vmatprep.subr.mxu0 0.0
  %351 = vmatpush1.msra.mxu0 0.0
  %352 = vmatprep.subr.mxu0 0.0
  %353 = vmatpush1.msra.mxu0 0.0
  %354 = vmatprep.subr.mxu0 0.0
  %355 = vmatpush1.msra.mxu0 0.0
  %356 = vmatprep.subr.mxu0 0.0
  %357 = vmatpush1.msra.mxu0 %v311
  %358 = vmatprep.subr.mxu0 0.0
  %359 = vmatpush2.msra.mxu0 0.0
  %360 = vmatprep.subr.mxu0 0.0
  %361 = vmatpush2.msra.mxu0 0.0
  %362 = vmatprep.subr.mxu0 0.0
  %363 = vmatpush2.msra.mxu0 0.0
  %364 = vmatprep.subr.mxu0 0.0
  %365 = vmatpush2.msra.mxu0 0.0
  %366 = vmatprep.subr.mxu0 0.0
  %367 = vmatpush2.msra.mxu0 0.0
  %368 = vmatprep.subr.mxu0 0.0
  %369 = vmatpush2.msra.mxu0 0.0
  %370 = vmatprep.subr.mxu0 0.0
  %371 = vmatpush2.msra.mxu0 0.0
  %372 = vmatprep.subr.mxu0 0.0
  %373 = vmatpush2.msra.mxu0 0.0
  %374 = vmatprep.subr.mxu0 0.0
  %375 = vmatpush2.msra.mxu0 0.0
  %376 = vmatprep.subr.mxu0 0.0
  %377 = vmatpush2.msra.mxu0 0.0
  %378 = vmatprep.subr.mxu0 0.0
  %379 = vmatpush2.msra.mxu0 0.0
  %380 = vmatprep.subr.mxu0 0.0
  %381 = vmatpush2.msra.mxu0 0.0
  %382 = vmatprep.subr.mxu0 0.0
  %383 = vmatpush2.msra.mxu0 0.0
  %384 = vmatprep.subr.mxu0 0.0
  %385 = vmatpush2.msra.mxu0 0.0
  %386 = vmatprep.subr.mxu0 0.0
  %387 = vmatpush2.msra.mxu0 0.0
  %388 = vmatprep.subr.mxu0 0.0
  %389 = vmatpush2.msra.mxu0 0.0
  %390 = vmatprep.mubr.f32.mxu0 0.0
  %391 = vmatmul.mubr.f32.gmra.mxu0 %v324
  %v392 = vpop.f32.mrf.mxu0
  %v393 = vadd.f32 %v322, %v392
  %v394 = vpop.f32.mrf.mxu0
  %395 = vdwg.mxu0
  %v396 = vmax.f32 %v393, 0.0
  %397 = vst [vmem:[%s9] sm:$0x1] %v396
  // Predicated region
  $region38: #{qnet_forward.1} parent=0 // pred_check
    _
  $region39: #{qnet_forward.1} parent=0 // pred_check_branch
    %399 = sbr.rel (0) target = $region41
  $region40: #{qnet_forward.1} parent=0 // pred_region
    _
  $region41: #{qnet_forward.1} parent=0 // pred_fallthru
    _
  // Predicated region
  $region42: #{qnet_forward.1} parent=0 // pred_check
    _
  $region43: #{qnet_forward.1} parent=0 // pred_check_branch
    %401 = sbr.rel (0) target = $region45
  $region44: #{qnet_forward.1} parent=0 // pred_region
    _
  $region45: #{qnet_forward.1} parent=0 // pred_fallthru
    _

</llo_original>
